<compile_context>
chip_gen: v7x
topology: tpu7x:2x2x1
jax: 0.10.0
libtpu: 0.0.40
codegen_flags: <defaults>
</compile_context>

<pallas_src>
import functools
import math

import jax
import jax.numpy as jnp
import numpy as np
from jax.experimental import pallas as pl
from jax.experimental.pallas import tpu as pltpu

MATMUL_DTYPE = jnp.bfloat16          # matmul-input dtype (f32 MXU accumulation)


def _round_up(x, m):
    return ((x + m - 1) // m) * m


@functools.lru_cache(maxsize=None)
def _vmem_budgets():
    """Return (r_tile_budget_bytes, vmem_limit_bytes, capacity_bytes), per generation."""
    try:
        cap = int(pltpu.get_tpu_info().vmem_capacity_bytes)
    except Exception:
        cap = 64 * 1024 * 1024                         # v7x-safe assumption
    if cap >= 100 * 1024 * 1024:                       # v5e / v6e: 128 MiB physical VMEM
        return 24 * 1024 * 1024, 96 * 1024 * 1024, cap
    return 8 * 1024 * 1024, 48 * 1024 * 1024, cap      # v7x: 64 MiB physical VMEM


# ----------------------------------------------------------------------------
# Row-tiled linear projection:  y = x @ W^T + b   (PyTorch nn.Linear semantics)
# Weights arrive pre-transposed + pre-cast to bf16 from the wrapper.
# ----------------------------------------------------------------------------
def _linear_kernel(x_ref, wt_ref, b_ref, o_ref):
    x = x_ref[...].astype(MATMUL_DTYPE)
    y = jnp.dot(x, wt_ref[...], preferred_element_type=jnp.float32) + b_ref[...]
    o_ref[...] = y.astype(o_ref.dtype)


def pallas_linear(x2d, wt_bf16, b_f32, out_dtype=jnp.float32):
    """x2d: (N, F_in), wt_bf16: (F_in, F_out) bf16, b_f32: (1, F_out) f32 -> (N, F_out)."""
    n, f_in = x2d.shape
    f_out = wt_bf16.shape[1]
    _, vmem_limit, _ = _vmem_budgets()

    tr = min(512, _round_up(n, 8))                 # row tile
    n_pad = _round_up(n, tr)
    if n_pad != n:
        x2d = jnp.pad(x2d, ((0, n_pad - n), (0, 0)))

    out = pl.pallas_call(
        _linear_kernel,
        grid=(n_pad // tr,),
        in_specs=[
            pl.BlockSpec((tr, f_in), lambda i: (i, 0)),
            pl.BlockSpec((f_in, f_out), lambda i: (0, 0)),   # resident across row tiles
            pl.BlockSpec((1, f_out), lambda i: (0, 0)),
        ],
        out_specs=pl.BlockSpec((tr, f_out), lambda i: (i, 0)),
        out_shape=jax.ShapeDtypeStruct((n_pad, f_out), out_dtype),
        compiler_params=pltpu.CompilerParams(
            dimension_semantics=("parallel",),
            vmem_limit_bytes=vmem_limit,
        ),
    )(x2d, wt_bf16, b_f32)
    return out[:n]


# ----------------------------------------------------------------------------
# Relative multi-head attention: one (q-tile, batch) per grid step, all heads.
# Batch is the innermost (arbitrary) axis so the r block stays resident.
# ----------------------------------------------------------------------------
def _xl_attn_kernel(q_ref, k_ref, v_ref, r_ref, rwb_ref, rrb_ref, mask_ref, o_ref,
                    *, num_heads, d_k):
    f32 = jnp.float32
    cdt = q_ref.dtype
    scale = 1.0 / math.sqrt(d_k)

    q = q_ref[0].astype(f32)                        # (tq, F)
    rw_q = (q + rwb_ref[...]) * scale               # scale folded into q (f32)
    rr_q = (q + rrb_ref[...]) * scale
    rw_q_c = rw_q.astype(cdt)

    k = k_ref[0]                                    # (T2, F) compute dtype
    v = v_ref[0]                                    # (T2, F)

    is_masked = mask_ref[0] == 0                    # direct int8 compare, (tq, T2)
    min_value = jnp.finfo(f32).min

    for h in range(num_heads):                      # small static head count: unrolled
        lo = h * d_k
        hi = lo + d_k

        # AC: MXU dot, contracting the last dims directly (no in-kernel .T).
        ac = jax.lax.dot_general(
            rw_q_c[:, lo:hi], k[:, lo:hi],
            (((1,), (1,)), ((), ())),
            preferred_element_type=f32)             # (tq, T2)

        # BD: pairwise relative table -> multiply + reduce over d_k (f32, safe on v5e).
        r_h = r_ref[:, :, lo:hi].astype(f32)        # (tq, T2, d_k)
        bd = jnp.sum(rr_q[:, lo:hi][:, None, :] * r_h, axis=-1)  # (tq, T2)

        scores = jnp.where(is_masked, min_value, ac + bd)
        m = jnp.max(scores, axis=-1, keepdims=True)
        e = jnp.exp(scores - m)
        denom = jnp.sum(e, axis=-1, keepdims=True)
        attn = e * pl.reciprocal(denom, approx=True)
        attn = jnp.where(is_masked, 0.0, attn)

        ctx_h = jax.lax.dot_general(
            attn.astype(cdt), v[:, lo:hi],
            (((1,), (0,)), ((), ())),
            preferred_element_type=f32)             # (tq, d_k)

        # stream each head's result straight out; no list / concatenate
        o_ref[0, :, lo:hi] = ctx_h.astype(o_ref.dtype)


def _choose_query_tile(t1, t2, f, itemsize, budget):
    # Keep the (tq, T2, F) r block (the dominant, double-buffered DMA stream)
    # within the per-generation VMEM budget.
    rows = max(8, budget // max(1, t2 * f * itemsize))
    tq = min(256, rows, _round_up(t1, 8))
    return max(8, (tq // 8) * 8)


def pallas_xl_attention(q, k, v, r, r_w_bias, r_r_bias, mask, num_heads, d_k):
    """q/k/v: (B, T, F) ; r: (T1, T2, F) ; mask: (B, T1, T2) -> (B, T1, F) bf16."""
    B, T1, F = q.shape
    T2 = k.shape[1]

    r_budget, vmem_limit, cap = _vmem_budgets()
    itemsize = jnp.dtype(r.dtype).itemsize
    tq = _choose_query_tile(T1, T2, F, itemsize, r_budget)
    T1p = _round_up(T1, tq)
    if T1p != T1:                                   # padded query rows are fully masked
        q = jnp.pad(q, ((0, 0), (0, T1p - T1), (0, 0)))
        r = jnp.pad(r, ((0, T1p - T1), (0, 0), (0, 0)))
        mask = jnp.pad(mask, ((0, 0), (0, T1p - T1), (0, 0)))

    # If the floor tile (tq=8) still exceeds the per-generation budget, raise the
    # scoped-VMEM limit (capped below physical capacity) instead of failing.
    resident = (2 * tq * T2 * F * itemsize          # double-buffered r stream
                + 4 * T2 * F * itemsize             # k + v, double-buffered
                + 4 * tq * F * itemsize             # q + out, double-buffered
                + 2 * tq * T2                       # int8 mask, double-buffered
                + 6 * tq * T2 * 4)                  # in-kernel f32 temporaries
    vmem_limit = max(vmem_limit, min(int(resident * 1.5), cap - (8 << 20)))

    mask_i8 = (mask != 0).astype(jnp.int8)
    rwb = r_w_bias.reshape(1, F).astype(jnp.float32)
    rrb = r_r_bias.reshape(1, F).astype(jnp.float32)

    kernel = functools.partial(_xl_attn_kernel, num_heads=num_heads, d_k=d_k)
    out = pl.pallas_call(
        kernel,
        # Batch is the INNER grid axis: the r BlockSpec index depends only on
        # the q-tile, so Pallas keeps the r tile resident across batch steps
        # (fetched once per q-tile instead of once per (q-tile, batch)).
        grid=(T1p // tq, B),
        in_specs=[
            pl.BlockSpec((1, tq, F), lambda qi, bi: (bi, qi, 0)),   # q
            pl.BlockSpec((1, T2, F), lambda qi, bi: (bi, 0, 0)),    # k
            pl.BlockSpec((1, T2, F), lambda qi, bi: (bi, 0, 0)),    # v
            pl.BlockSpec((tq, T2, F), lambda qi, bi: (qi, 0, 0)),   # r (T1-tiled, batch-invariant)
            pl.BlockSpec((1, F), lambda qi, bi: (0, 0)),            # r_w_bias
            pl.BlockSpec((1, F), lambda qi, bi: (0, 0)),            # r_r_bias
            pl.BlockSpec((1, tq, T2), lambda qi, bi: (bi, qi, 0)),  # mask (int8)
        ],
        out_specs=pl.BlockSpec((1, tq, F), lambda qi, bi: (bi, qi, 0)),
        out_shape=jax.ShapeDtypeStruct((B, T1p, F), MATMUL_DTYPE),
        compiler_params=pltpu.CompilerParams(
            dimension_semantics=("parallel", "arbitrary"),
            vmem_limit_bytes=vmem_limit,
        ),
    )(q, k, v, r, rwb, rrb, mask_i8)
    return out[:, :T1, :]


# ----------------------------------------------------------------------------
# Module forward (heads handled inside the attention kernel; no XLA transposes)
# ----------------------------------------------------------------------------
def _prep_linear(w, b):
    # one-time transpose + bf16 cast in the wrapper (weights are re-used by
    # every row tile, so pre-casting halves their DMA bytes)
    return w.T.astype(MATMUL_DTYPE), b.reshape(1, -1).astype(jnp.float32)


def mha_xl_forward(params, query, key, value, r_emb, mask):
    B, T1, F = query.shape
    T2 = key.shape[1]
    H, dk = params["h"], params["d_k"]
    cdt = MATMUL_DTYPE

    wq = _prep_linear(*params["linear_q"])
    wk = _prep_linear(*params["linear_k"])
    wv = _prep_linear(*params["linear_v"])
    wr = _prep_linear(*params["linear_r"])
    wo = _prep_linear(*params["linear_out"])

    # TODO(synk): when query/key/value are the same tensor, the three projections
    # could be fused into one (3F, F) GEMM; kept separate to match the module API.
    q = pallas_linear(query.reshape(B * T1, F), *wq, out_dtype=cdt).reshape(B, T1, F)
    k = pallas_linear(key.reshape(B * T2, F), *wk, out_dtype=cdt).reshape(B, T2, F)
    v = pallas_linear(value.reshape(B * T2, F), *wv, out_dtype=cdt).reshape(B, T2, F)
    r = pallas_linear(r_emb.reshape(T1 * T2, F), *wr, out_dtype=cdt).reshape(T1, T2, F)

    ctx = pallas_xl_attention(q, k, v, r, params["r_w_bias"], params["r_r_bias"],
                              mask, H, dk)                       # (B, T1, F) bf16

    out = pallas_linear(ctx.reshape(B * T1, F), *wo, out_dtype=jnp.float32)
    return out.reshape(B, T1, F)


# ----------------------------------------------------------------------------
# Pure-JAX reference mirroring the kernel's mixed-precision recipe
# ----------------------------------------------------------------------------
def reference_forward(params, query, key, value, r_emb, mask):
    f32 = jnp.float32
    cdt = MATMUL_DTYPE
    B, T1, F = query.shape
    T2 = key.shape[1]
    H, dk = params["h"], params["d_k"]

    def lin(x2d, wb, out_dtype):
        W, b = wb
        y = jnp.dot(x2d.astype(cdt), W.T.astype(cdt),
                    preferred_element_type=f32) + b
        return y.astype(out_dtype)

    q = lin(query.reshape(B * T1, F), params["linear_q"], cdt).reshape(B, T1, H, dk)
    k = lin(key.reshape(B * T2, F), params["linear_k"], cdt).reshape(B, T2, H, dk)
    v = lin(value.reshape(B * T2, F), params["linear_v"], cdt).reshape(B, T2, H, dk)
    r = lin(r_emb.reshape(T1 * T2, F), params["linear_r"], cdt).reshape(T1, T2, H, dk)

    scale = 1.0 / math.sqrt(dk)
    qf = q.astype(f32)
    rw_q = (qf + params["r_w_bias"]) * scale
    rr_q = (qf + params["r_r_bias"]) * scale

    ac = jnp.einsum("bihd,bjhd->bhij", rw_q.astype(cdt), k,
                    preferred_element_type=f32)
    bd = jnp.einsum("bihd,ijhd->bhij", rr_q, r.astype(f32),
                    preferred_element_type=f32)
    scores = ac + bd

    m = mask[:, None, :, :] == 0
    scores = jnp.where(m, jnp.finfo(f32).min, scores)
    attn = jax.nn.softmax(scores, axis=-1)
    attn = jnp.where(m, 0.0, attn)

    ctx = jnp.einsum("bhij,bjhd->bihd", attn.astype(cdt), v,
                     preferred_element_type=f32).reshape(B, T1, H * dk)
    return lin(ctx.reshape(B * T1, F), params["linear_out"], f32).reshape(B, T1, F)


# ----------------------------------------------------------------------------
# Deterministic parameter init + demo run
# ----------------------------------------------------------------------------
def init_linear(key, f_out, f_in):
    kw, kb = jax.random.split(key)
    bound = 1.0 / math.sqrt(f_in)
    W = jax.random.uniform(kw, (f_out, f_in), jnp.float32, -bound, bound)
    b = jax.random.uniform(kb, (f_out,), jnp.float32, -bound, bound)
    return W, b


if __name__ == "__main__":
    B, T, F, H = 2, 8, 32, 4
    dk = F // H

    root = jax.random.PRNGKey(0)
    keys = jax.random.split(root, 12)

    params = {
        "h": H,
        "d_k": dk,
        "linear_q": init_linear(keys[0], F, F),
        "linear_k": init_linear(keys[1], F, F),
        "linear_v": init_linear(keys[2], F, F),
        "linear_r": init_linear(keys[3], F, F),
        "linear_out": init_linear(keys[4], F, F),
        "r_w_bias": 0.02 * jax.random.normal(keys[5], (H, dk), jnp.float32),
        "r_r_bias": 0.02 * jax.random.normal(keys[6], (H, dk), jnp.float32),
    }

    query = jax.random.normal(keys[7], (B, T, F), jnp.float32)
    key_in = jax.random.normal(keys[8], (B, T, F), jnp.float32)
    value = jax.random.normal(keys[9], (B, T, F), jnp.float32)
    r_emb = jax.random.normal(keys[10], (T, T, F), jnp.float32)

    # mask (batch, time1, time2); 0 = masked. Mask out last 2 key steps of batch 1.
    mask = jnp.ones((B, T, T), jnp.int32)
    mask = mask.at[1, :, -2:].set(0)

    out = mha_xl_forward(params, query, key_in, value, r_emb, mask)
    out = jax.block_until_ready(out)

    ref = reference_forward(params, query, key_in, value, r_emb, mask)
    np.testing.assert_allclose(np.asarray(out), np.asarray(ref), rtol=2e-2, atol=2e-2)

    print("KERNEL_OK")
</pallas_src>

<mosaic_0001>
module attributes {stable_mosaic.version = 11 : i64} {
  func.func @_linear_kernel(%arg0: i32, %arg1: memref<16x32xf32, #tpu.memory_space<vmem>>, %arg2: memref<32x32xbf16, #tpu.memory_space<vmem>>, %arg3: memref<1x32xf32, #tpu.memory_space<vmem>>, %arg4: memref<16x32xbf16, #tpu.memory_space<vmem>>) attributes {dimension_semantics = [#tpu.dimension_semantics<parallel>], iteration_bounds = array<i64: 1>, scalar_prefetch = 0 : i64, scratch_operands = 0 : i64, tpu.core_type = #tpu.core_type<tc>, window_params = [{transform_indices = @transform_0, window_bounds = array<i64: 16, 32>}, {pipeline_mode = #tpu.pipeline_mode<synchronous>, transform_indices = @transform_1, window_bounds = array<i64: 32, 32>}, {pipeline_mode = #tpu.pipeline_mode<synchronous>, transform_indices = @transform_2, window_bounds = array<i64: 1, 32>}, {transform_indices = @transform_3, window_bounds = array<i64: 16, 32>}]} {
    %c0 = arith.constant 0 : index
    %c0_0 = arith.constant 0 : index
    %0 = vector.load %arg1[%c0, %c0_0] : memref<16x32xf32, #tpu.memory_space<vmem>>, vector<16x32xf32>
    %1 = arith.truncf %0 : vector<16x32xf32> to vector<16x32xbf16>
    %c0_1 = arith.constant 0 : index
    %c0_2 = arith.constant 0 : index
    %2 = vector.load %arg2[%c0_1, %c0_2] : memref<32x32xbf16, #tpu.memory_space<vmem>>, vector<32x32xbf16>
    %cst = arith.constant dense<0.000000e+00> : vector<16x32xf32>
    %3 = tpu.matmul %1, %2, %cst {dimension_numbers = #tpu.dot_dimension_numbers<[1], [0], [0], [1], [0, 0, 1, 1], [], []>} : vector<16x32xbf16>, vector<32x32xbf16>, vector<16x32xf32> -> vector<16x32xf32>
    %c0_3 = arith.constant 0 : index
    %c0_4 = arith.constant 0 : index
    %4 = vector.load %arg3[%c0_3, %c0_4] : memref<1x32xf32, #tpu.memory_space<vmem>>, vector<1x32xf32>
    %5 = vector.broadcast %4 : vector<1x32xf32> to vector<16x32xf32>
    %6 = arith.addf %3, %5 : vector<16x32xf32>
    %7 = arith.truncf %6 : vector<16x32xf32> to vector<16x32xbf16>
    %c0_5 = arith.constant 0 : index
    %c0_6 = arith.constant 0 : index
    %8 = vector.load %arg4[%c0_5, %c0_6] : memref<16x32xbf16, #tpu.memory_space<vmem>>, vector<16x32xbf16>
    tpu.vector_store %arg4[%c0_5, %c0_6], %7 {strides = array<i32>} : memref<16x32xbf16, #tpu.memory_space<vmem>>, vector<16x32xbf16>,
    return
  }
  func.func @transform_0(%arg0: i32) -> (i32, i32) {
    %c0_i32 = arith.constant 0 : i32
    %c0_i32_0 = arith.constant 0 : i32
    return %arg0, %c0_i32 : i32, i32
  }
  func.func @transform_1(%arg0: i32) -> (i32, i32) {
    %c0_i32 = arith.constant 0 : i32
    %c0_i32_0 = arith.constant 0 : i32
    %c0_i32_1 = arith.constant 0 : i32
    return %c0_i32, %c0_i32_0 : i32, i32
  }
  func.func @transform_2(%arg0: i32) -> (i32, i32) {
    %c0_i32 = arith.constant 0 : i32
    %c0_i32_0 = arith.constant 0 : i32
    %c0_i32_1 = arith.constant 0 : i32
    return %c0_i32, %c0_i32_0 : i32, i32
  }
  func.func @transform_3(%arg0: i32) -> (i32, i32) {
    %c0_i32 = arith.constant 0 : i32
    %c0_i32_0 = arith.constant 0 : i32
    return %arg0, %c0_i32 : i32, i32
  }
}

</mosaic_0001>

<llo_original>
// kernel: tpu_custom_call.1
$region0: #{tpu_custom_call.1}
  #allocation0 [shape = 'u32[]', space=smem, size = 0x4, offset = 0x4, fixed_abs, tag = 'smem constant byte address 0x4 - core index']
  #allocation1 [shape = 'u32[144,128]{1,0:T(1,128)}', space=vmem, size = 0x12000, scoped, tag = 'internal scratch']
  %s0 = inlined_call_operand.hbm [shape: f32[16,32], index: 0, kind: input, shape index: {}]
  %s1 = inlined_call_operand.hbm [shape: bf16[32,32], index: 1, kind: input, shape index: {}]
  %s2 = inlined_call_operand.vmem [shape: f32[1,32], index: 2, kind: input, shape index: {}]
  %s3 = inlined_call_operand.hbm [shape: bf16[16,32], index: 3, kind: output, shape index: {}]
  %s4 = sld [smem:[#allocation0]]
  $region30: #{tpu_custom_call.1} parent=0
    _
  %s6 = ssub.s32 1, %s4
  %s7 = scalar_select 0, %s6, %s4
  $region1: #{tpu_custom_call.1} parent=0
    #allocation2 [shape = 'u8[8192]{0}', space=vmem, size = 0x2000, scoped, tag = 'input window, operand 0, single buffered']
    #allocation3 [shape = 's32[1]{0}', space=sflag, size = 0x4, scoped, tag = 'scoped memory for tpu_custom_call.1']
    #allocation4 [shape = 's32[1]{0}', space=sflag, size = 0x4, scoped, tag = 'scoped memory for tpu_custom_call.1']
    #allocation5 [shape = 'u8[8192]{0}', space=vmem, size = 0x2000, scoped, tag = 'input window, operand 1, single buffered']
    #allocation6 [shape = 's32[1]{0}', space=sflag, size = 0x4, scoped, tag = 'scoped memory for tpu_custom_call.1']
    #allocation7 [shape = 'u8[4096]{0}', space=vmem, size = 0x1000, scoped, tag = 'output window, operand 0, single buffered']
    %8 = vsyncpa [#allocation3], 0
    %9 = vsyncpa [#allocation6], 0
    %10 = vsyncpa [#allocation4], 0
    // Predicated region
    $region2: #{tpu_custom_call.1} parent=1 // pred_check
      _
    $region3: #{tpu_custom_call.1} parent=1 // pred_check_branch
      %12 = sbr.rel (0) target = $region5
    $region4: #{tpu_custom_call.1} parent=1 // pred_region
      %s14 = ssub.s32 256, 256
      %15 = vsyncadd [#allocation3], %s14
      %s16 = sshll.u32 [#allocation2], 4
      %s17 = int_to_ptr.vmem [resolvable:$true] %s16
      %22 = dma.hbm_to_vmem [thread:$0]  %s0, 256, %s17, [#allocation3], 128, 128, 8
    $region5: #{tpu_custom_call.1} parent=1 // pred_fallthru
      _
    // Predicated region
    $region6: #{tpu_custom_call.1} parent=1 // pred_check
      _
    $region7: #{tpu_custom_call.1} parent=1 // pred_check_branch
      %24 = sbr.rel (0) target = $region9
    $region8: #{tpu_custom_call.1} parent=1 // pred_region
      %s26 = ssub.s32 256, 256
      %27 = vsyncadd [#allocation6], %s26
      %s28 = sshll.u32 [#allocation5], 4
      %s29 = int_to_ptr.vmem [resolvable:$true] %s28
      %34 = dma.hbm_to_vmem [thread:$0]  %s1, 256, %s29, [#allocation6], 64, 64, 4
    $region9: #{tpu_custom_call.1} parent=1 // pred_fallthru
      _
    // Predicated region
    $region10: #{tpu_custom_call.1} parent=1 // pred_check
      _
    $region11: #{tpu_custom_call.1} parent=1 // pred_check_branch
      %36 = sbr.rel (0) target = $region13
    $region12: #{tpu_custom_call.1} parent=1 // pred_region
      _
    $region13: #{tpu_custom_call.1} parent=1 // pred_fallthru
      _
    // Predicated region
    $region14: #{tpu_custom_call.1} parent=1 // pred_check
      _
    $region15: #{tpu_custom_call.1} parent=1 // pred_check_branch
      %38 = sbr.rel (0) target = $region17
    $region16: #{tpu_custom_call.1} parent=1 // pred_region
      %39 = dma.done [#allocation3], 256
    $region17: #{tpu_custom_call.1} parent=1 // pred_fallthru
      _
    // Predicated region
    $region18: #{tpu_custom_call.1} parent=1 // pred_check
      _
    $region19: #{tpu_custom_call.1} parent=1 // pred_check_branch
      %41 = sbr.rel (0) target = $region21
    $region20: #{tpu_custom_call.1} parent=1 // pred_region
      %42 = dma.done [#allocation6], 256
    $region21: #{tpu_custom_call.1} parent=1 // pred_fallthru
      _
    %v44 = vld [vmem:[#allocation2] sm:$0xff]
    %v45 = vld [vmem:[#allocation2 + $0x8] sm:$0xff]
    %v46 = vpack.c.bf16 %v45, %v44
    %v47 = vld [vmem:[#allocation5] sm:$0xf]
    %v48 = vld [vmem:[#allocation5 + $0x4] sm:$0xf]
    %v49 = vld [vmem:[#allocation5 + $0x8] sm:$0xf]
    %v50 = vld [vmem:[#allocation5 + $0xc] sm:$0xf]
    %v51 = vld [vmem:[%s2] sm:$0x1]
    %v53 = vlaneseq
    %v54 = vshrl.u32 %v53, 7
    %v55 = vsub.s32 0, %v54
    %v56 = vrot.slane %v51, %v55
    %v62 = vunpack.c.l.b16 %v47
    %v63 = vunpack.c.l.b16 %v48
    %v64 = vunpack.c.l.b16 %v49
    %v65 = vunpack.c.l.b16 %v50
    %v66 = vpack.c.b16 %v63, %v62
    %v67 = vpack.c.b16 %v65, %v64
    %vm70 = vcmask 261120
    %v72 = vsel %vm70, %v46, 0
    %74 = vmatprep.subr.bf16.mxu0 0
    %75 = vmatpush1.bf16.msra.mxu0 %v66
    %76 = vmatprep.subr.bf16.mxu0 0
    %77 = vmatpush1.bf16.msra.mxu0 %v67
    %78 = vmatprep.subr.bf16.mxu0 0
    %79 = vmatpush1.bf16.msra.mxu0 0
    %80 = vmatprep.subr.bf16.mxu0 0
    %81 = vmatpush1.bf16.msra.mxu0 0
    %82 = vmatprep.subr.bf16.mxu0 0
    %83 = vmatpush1.bf16.msra.mxu0 0
    %84 = vmatprep.subr.bf16.mxu0 0
    %85 = vmatpush1.bf16.msra.mxu0 0
    %86 = vmatprep.subr.bf16.mxu0 0
    %87 = vmatpush1.bf16.msra.mxu0 0
    %88 = vmatprep.subr.bf16.mxu0 0
    %89 = vmatpush1.bf16.msra.mxu0 0
    %90 = vmatprep.subr.bf16.mxu0 0
    %91 = vmatpush1.bf16.msra.mxu0 0
    %92 = vmatprep.subr.bf16.mxu0 0
    %93 = vmatpush1.bf16.msra.mxu0 0
    %94 = vmatprep.subr.bf16.mxu0 0
    %95 = vmatpush1.bf16.msra.mxu0 0
    %96 = vmatprep.subr.bf16.mxu0 0
    %97 = vmatpush1.bf16.msra.mxu0 0
    %98 = vmatprep.subr.bf16.mxu0 0
    %99 = vmatpush1.bf16.msra.mxu0 0
    %100 = vmatprep.subr.bf16.mxu0 0
    %101 = vmatpush1.bf16.msra.mxu0 0
    %102 = vmatprep.subr.bf16.mxu0 0
    %103 = vmatpush1.bf16.msra.mxu0 0
    %104 = vmatprep.subr.bf16.mxu0 0
    %105 = vmatpush1.bf16.msra.mxu0 0
    %106 = vmatprep.mubr.bf16.mxu0 0
    %107 = vmatmul.mubr.bf16.gmra.mrb[0].mxu0 %v72
    %v108 = vpop.f32.mrb[0].mxu0
    %v109 = vadd.f32 %v56, %v108
    %v110 = vpop.f32.mrb[0].mxu0
    %v111 = vpop.f32.mrb[0].mxu0
    %v112 = vadd.f32 %v56, %v111
    %v113 = vpop.f32.mrb[0].mxu0
    %114 = vdwg.mxu0
    %v115 = vpack.c.bf16 %v112, %v109
    %v117 = vunpack.c.l.b16 %v115
    %v118 = vunpack.c.h.b16 %v115
    %v119 = vpack.c.b16 %v117, %v117
    %v120 = vpack.c.b16 %v118, %v118
    %vm123 = vcmask 257024
    %124 = vst.msk [vmem:[#allocation7] sm:$0xf] %vm123, %v119
    %125 = vst.msk [vmem:[#allocation7 + $0x4] sm:$0xf] %vm123, %v120
    // Predicated region
    $region22: #{tpu_custom_call.1} parent=1 // pred_check
      _
    $region23: #{tpu_custom_call.1} parent=1 // pred_check_branch
      %127 = sbr.rel (0) target = $region25
    $region24: #{tpu_custom_call.1} parent=1 // pred_region
      %s129 = ssub.s32 128, 128
      %130 = vsyncadd [#allocation4], %s129
      %s131 = sshll.u32 [#allocation7], 4
      %s132 = int_to_ptr.vmem [resolvable:$true] %s131
      %137 = dma.vmem_to_hbm [thread:$0]  %s132, 128, %s3, [#allocation4], 64, 64, 4
    $region25: #{tpu_custom_call.1} parent=1 // pred_fallthru
      _
    // Predicated region
    $region26: #{tpu_custom_call.1} parent=1 // pred_check
      _
    $region27: #{tpu_custom_call.1} parent=1 // pred_check_branch
      %139 = sbr.rel (0) target = $region29
    $region28: #{tpu_custom_call.1} parent=1 // pred_region
      %140 = dma.done [#allocation4], 128
    $region29: #{tpu_custom_call.1} parent=1 // pred_fallthru
      _
    %141 = vsyncpa [#allocation3], 1
    %142 = vsyncpa [#allocation6], 1
    %143 = vsyncpa [#allocation4], 1

</llo_original>
